<compile_context>
chip_gen: v5e
topology: v5e:2x2
jax: 0.10.0
libtpu: 0.0.40
codegen_flags: <defaults>
</compile_context>

<pallas_src>
import functools

import jax
import jax.numpy as jnp
from jax.experimental import pallas as pl
from jax.experimental.pallas import tpu as pltpu  # noqa: F401  (TPU backend)

EPS = 1e-5


def _round_up(v, m=128):
    return ((v + m - 1) // m) * m


# ----------------------------- Pallas kernel ------------------------------- #

def _fused_mlp_kernel(x_ref, w_ref, b_ref, out_ref, *, n_trunk,
                      head_inter_counts):
    """Whole network, fully unrolled.  All layers padded to (PAD, PAD).

    x_ref  : (B, PAD)        f32   lane-dense, zero-padded input
    w_ref  : (L, PAD, PAD)   bf16  stacked folded weights
    b_ref  : (L, PAD)        f32   stacked folded biases
    out_ref: (H, B, PAD)     f32   one lane-dense slab per head
    """

    def layer(h, l, relu):
        y = jnp.dot(h.astype(jnp.bfloat16), w_ref[l],
                    preferred_element_type=jnp.float32) + b_ref[l]
        return jnp.maximum(y, 0.0) if relu else y

    l = 0
    h = x_ref[...]
    for _ in range(n_trunk):                      # shared trunk
        h = layer(h, l, relu=True)
        l += 1

    for hd, n_int in enumerate(head_inter_counts):  # independent heads
        xi = h
        for _ in range(n_int):
            xi = layer(xi, l, relu=True)
            l += 1
        out_ref[hd] = layer(xi, l, relu=False).astype(out_ref.dtype)
        l += 1


# ------------------------------ Wrapper ------------------------------------ #

@functools.partial(jax.jit,
                   static_argnames=("n_trunk", "head_inter_counts",
                                    "out_widths"))
def _forward_impl(x, w_stack, b_stack, *, n_trunk, head_inter_counts,
                  out_widths):
    B, d_in = x.shape
    pad = w_stack.shape[-1]
    n_heads = len(head_inter_counts)

    x_pad = jnp.zeros((B, pad), jnp.float32).at[:, :d_in].set(
        x.astype(jnp.float32))

    kernel = functools.partial(_fused_mlp_kernel, n_trunk=n_trunk,
                               head_inter_counts=head_inter_counts)
    stacked = pl.pallas_call(
        kernel,
        out_shape=jax.ShapeDtypeStruct((n_heads, B, pad), jnp.float32),
    )(x_pad, w_stack, b_stack)

    return tuple(stacked[i, :, :w] for i, w in enumerate(out_widths))


def forward_pallas(packed, x):
    return _forward_impl(x, packed["w_stack"], packed["b_stack"],
                         n_trunk=packed["n_trunk"],
                         head_inter_counts=packed["head_inter_counts"],
                         out_widths=packed["out_widths"])


# --------------------------- Parameter creation ----------------------------- #

def _linear_params(key, fan_in, fan_out):
    kw, kb = jax.random.split(key)
    bound = 1.0 / jnp.sqrt(fan_in)
    w = jax.random.uniform(kw, (fan_in, fan_out), jnp.float32, -bound, bound)
    b = jax.random.uniform(kb, (fan_out,), jnp.float32, -bound, bound)
    return w, b


def _bn_params(key, num_features):
    kg, kb, km, kv = jax.random.split(key, 4)
    gamma = jax.random.uniform(kg, (num_features,), jnp.float32, 0.5, 1.5)
    beta = 0.1 * jax.random.normal(kb, (num_features,), jnp.float32)
    mean = 0.1 * jax.random.normal(km, (num_features,), jnp.float32)
    var = jax.random.uniform(kv, (num_features,), jnp.float32, 0.5, 1.5)
    scale = gamma / jnp.sqrt(var + EPS)
    shift = beta - mean * scale
    return scale, shift


def build_params(key, input_shape, hidden_size, intermediate_layers,
                 output_shapes, hidden_shape, intermediate_shape):
    """Raw (unfolded) eval-mode parameters, mirroring the PyTorch module."""
    params = {}
    key, k = jax.random.split(key)
    params["in_bn"] = _bn_params(k, input_shape)

    hidden = []
    for i in range(hidden_size):
        key, k1, k2 = jax.random.split(key, 3)
        fan_in = input_shape if i == 0 else hidden_shape
        w, b = _linear_params(k1, fan_in, hidden_shape)
        s, t = _bn_params(k2, hidden_shape)
        hidden.append((w, b, s, t))
    params["hidden"] = hidden

    heads = []
    for n_layers, out_shape in zip(intermediate_layers, output_shapes):
        inter = []
        for i in range(n_layers):
            key, k1, k2 = jax.random.split(key, 3)
            fan_in = hidden_shape if i == 0 else intermediate_shape
            w, b = _linear_params(k1, fan_in, intermediate_shape)
            s, t = _bn_params(k2, intermediate_shape)
            inter.append((w, b, s, t))
        key, k = jax.random.split(key)
        w_out, b_out = _linear_params(k, intermediate_shape, out_shape)
        heads.append((inter, (w_out, b_out)))
    params["heads"] = heads
    return params


def fold_and_pack(raw, output_shapes):
    """Fold every BN affine into the next Linear, pad to (PAD, PAD), stack.

    Layer order in the stack: trunk layers, then per head its intermediate
    layers followed by its (padded) output Linear.
    """
    dims = [raw["in_bn"][0].shape[0]]
    dims += [w.shape[1] for (w, _, _, _) in raw["hidden"]]
    for inter_raw, (w_out, _) in raw["heads"]:
        dims += [w.shape[1] for (w, _, _, _) in inter_raw]
        dims.append(w_out.shape[1])
    pad = _round_up(max(dims))

    def fold_into(w, b, pending):
        s, t = pending
        return s[:, None] * w, t @ w + b

    def pad_wb(w, b):
        wp = jnp.zeros((pad, pad), jnp.float32).at[:w.shape[0], :w.shape[1]].set(w)
        bp = jnp.zeros((pad,), jnp.float32).at[:b.shape[0]].set(b)
        return wp, bp

    weights, biases = [], []
    pending = raw["in_bn"]
    for (w, b, s, t) in raw["hidden"]:
        wp, bp = pad_wb(*fold_into(w, b, pending))
        weights.append(wp)
        biases.append(bp)
        pending = (s, t)

    head_inter_counts = []
    for inter_raw, (w_out, b_out) in raw["heads"]:
        head_inter_counts.append(len(inter_raw))
        hp = pending  # each head independently consumes the trunk's last BN
        for (w, b, s, t) in inter_raw:
            wp, bp = pad_wb(*fold_into(w, b, hp))
            weights.append(wp)
            biases.append(bp)
            hp = (s, t)
        wp, bp = pad_wb(*fold_into(w_out, b_out, hp))
        weights.append(wp)
        biases.append(bp)

    return {
        "w_stack": jnp.stack(weights).astype(jnp.bfloat16),  # (L, PAD, PAD)
        "b_stack": jnp.stack(biases),                         # (L, PAD) f32
        "n_trunk": len(raw["hidden"]),
        "head_inter_counts": tuple(head_inter_counts),
        "out_widths": tuple(output_shapes),
    }


# ------------------------------ References ---------------------------------- #

def forward_reference(raw, x):
    """Pure-JAX f32 reference of the original (unfolded) eval-mode math."""
    s_in, t_in = raw["in_bn"]
    h = x * s_in + t_in
    for (w, b, s, t) in raw["hidden"]:
        h = jnp.maximum(h @ w + b, 0.0) * s + t
    outputs = []
    for inter, (w_out, b_out) in raw["heads"]:
        x_i = h
        for (w, b, s, t) in inter:
            x_i = jnp.maximum(x_i @ w + b, 0.0) * s + t
        outputs.append(x_i @ w_out + b_out)
    return tuple(outputs)


def forward_emulation(packed, x):
    """Pure-JAX emulation of the kernel's exact folded/padded bf16 math."""
    pad = packed["w_stack"].shape[-1]
    W, bias = packed["w_stack"], packed["b_stack"]
    h = jnp.zeros((x.shape[0], pad), jnp.float32).at[:, :x.shape[1]].set(x)
    l = 0
    for _ in range(packed["n_trunk"]):
        h = jnp.maximum(
            jnp.dot(h.astype(jnp.bfloat16), W[l],
                    preferred_element_type=jnp.float32) + bias[l], 0.0)
        l += 1
    outs = []
    for n_int, width in zip(packed["head_inter_counts"], packed["out_widths"]):
        xi = h
        for _ in range(n_int):
            xi = jnp.maximum(
                jnp.dot(xi.astype(jnp.bfloat16), W[l],
                        preferred_element_type=jnp.float32) + bias[l], 0.0)
            l += 1
        y = jnp.dot(xi.astype(jnp.bfloat16), W[l],
                    preferred_element_type=jnp.float32) + bias[l]
        l += 1
        outs.append(y[:, :width])
    return tuple(outs)


# ---------------------------------- Main ------------------------------------ #

if __name__ == "__main__":
    # Small config consistent with the module's constructor args.
    B = 32
    input_shape = 16
    hidden_size = 2
    intermediate_layers = [2, 1]
    output_shapes = [8, 4]
    hidden_shape = 128
    intermediate_shape = 128
    dropout_rate = 0.1  # identity in eval mode

    key = jax.random.PRNGKey(0)
    key, kx, kp = jax.random.split(key, 3)
    x = jax.random.normal(kx, (B, input_shape), jnp.float32)

    raw = build_params(kp, input_shape, hidden_size, intermediate_layers,
                       output_shapes, hidden_shape, intermediate_shape)
    packed = fold_and_pack(raw, output_shapes)

    outs = forward_pallas(packed, x)
    outs = jax.block_until_ready(outs)

    # Tight check vs. a pure-JAX emulation of the same folded bf16 math.
    emu = forward_emulation(packed, x)
    for o, e in zip(outs, emu):
        assert o.shape == e.shape and o.dtype == e.dtype
        assert jnp.allclose(o, e, atol=1e-3, rtol=1e-3), \
            "mismatch vs bf16 emulation"

    # Semantic check vs. the f32 unfolded reference (loose: bf16 weights).
    refs = forward_reference(raw, x)
    for o, r in zip(outs, refs):
        assert o.shape == r.shape
        assert jnp.allclose(o, r, atol=3e-2, rtol=3e-2), \
            "mismatch vs f32 reference"

    print("KERNEL_OK")
</pallas_src>

<mosaic_0001>
module attributes {stable_mosaic.version = 11 : i64} {
  func.func @_fused_mlp_kernel(%arg0: memref<32x128xf32, #tpu.memory_space<vmem>>, %arg1: memref<7x128x128xbf16, #tpu.memory_space<vmem>>, %arg2: memref<7x128xf32, #tpu.memory_space<vmem>>, %arg3: memref<2x32x128xf32, #tpu.memory_space<vmem>>) attributes {dimension_semantics = [], scalar_prefetch = 0 : i64, scratch_operands = 0 : i64, tpu.core_type = #tpu.core_type<tc>} {
    %c0 = arith.constant 0 : index
    %c0_0 = arith.constant 0 : index
    %0 = vector.load %arg0[%c0, %c0_0] : memref<32x128xf32, #tpu.memory_space<vmem>>, vector<32x128xf32>
    %1 = arith.truncf %0 : vector<32x128xf32> to vector<32x128xbf16>
    %c0_1 = arith.constant 0 : index
    %c0_2 = arith.constant 0 : index
    %c0_3 = arith.constant 0 : index
    %2 = vector.load %arg1[%c0_1, %c0_2, %c0_3] : memref<7x128x128xbf16, #tpu.memory_space<vmem>>, vector<1x128x128xbf16>
    %3 = vector.shape_cast %2 : vector<1x128x128xbf16> to vector<128x128xbf16>
    %cst = arith.constant dense<0.000000e+00> : vector<32x128xf32>
    %4 = tpu.matmul %1, %3, %cst {dimension_numbers = #tpu.dot_dimension_numbers<[1], [0], [0], [1], [0, 0, 1, 1], [], []>} : vector<32x128xbf16>, vector<128x128xbf16>, vector<32x128xf32> -> vector<32x128xf32>
    %c0_4 = arith.constant 0 : index
    %c0_5 = arith.constant 0 : index
    %5 = vector.load %arg2[%c0_4, %c0_5] : memref<7x128xf32, #tpu.memory_space<vmem>>, vector<1x128xf32>
    %6 = vector.shape_cast %5 : vector<1x128xf32> to vector<128xf32>
    %7 = vector.shape_cast %6 : vector<128xf32> to vector<1x128xf32>
    %8 = vector.broadcast %7 : vector<1x128xf32> to vector<32x128xf32>
    %9 = arith.addf %4, %8 : vector<32x128xf32>
    %cst_6 = arith.constant 0.000000e+00 : f32
    %10 = vector.broadcast %cst_6 : f32 to vector<32x128xf32>
    %11 = arith.maximumf %9, %10 : vector<32x128xf32>
    %12 = arith.truncf %11 : vector<32x128xf32> to vector<32x128xbf16>
    %c1 = arith.constant 1 : index
    %c0_7 = arith.constant 0 : index
    %c0_8 = arith.constant 0 : index
    %13 = vector.load %arg1[%c1, %c0_7, %c0_8] : memref<7x128x128xbf16, #tpu.memory_space<vmem>>, vector<1x128x128xbf16>
    %14 = vector.shape_cast %13 : vector<1x128x128xbf16> to vector<128x128xbf16>
    %cst_9 = arith.constant dense<0.000000e+00> : vector<32x128xf32>
    %15 = tpu.matmul %12, %14, %cst_9 {dimension_numbers = #tpu.dot_dimension_numbers<[1], [0], [0], [1], [0, 0, 1, 1], [], []>} : vector<32x128xbf16>, vector<128x128xbf16>, vector<32x128xf32> -> vector<32x128xf32>
    %c1_10 = arith.constant 1 : index
    %c0_11 = arith.constant 0 : index
    %16 = vector.load %arg2[%c1_10, %c0_11] : memref<7x128xf32, #tpu.memory_space<vmem>>, vector<1x128xf32>
    %17 = vector.shape_cast %16 : vector<1x128xf32> to vector<128xf32>
    %18 = vector.shape_cast %17 : vector<128xf32> to vector<1x128xf32>
    %19 = vector.broadcast %18 : vector<1x128xf32> to vector<32x128xf32>
    %20 = arith.addf %15, %19 : vector<32x128xf32>
    %cst_12 = arith.constant 0.000000e+00 : f32
    %21 = vector.broadcast %cst_12 : f32 to vector<32x128xf32>
    %22 = arith.maximumf %20, %21 : vector<32x128xf32>
    %23 = arith.truncf %22 : vector<32x128xf32> to vector<32x128xbf16>
    %c2 = arith.constant 2 : index
    %c0_13 = arith.constant 0 : index
    %c0_14 = arith.constant 0 : index
    %24 = vector.load %arg1[%c2, %c0_13, %c0_14] : memref<7x128x128xbf16, #tpu.memory_space<vmem>>, vector<1x128x128xbf16>
    %25 = vector.shape_cast %24 : vector<1x128x128xbf16> to vector<128x128xbf16>
    %cst_15 = arith.constant dense<0.000000e+00> : vector<32x128xf32>
    %26 = tpu.matmul %23, %25, %cst_15 {dimension_numbers = #tpu.dot_dimension_numbers<[1], [0], [0], [1], [0, 0, 1, 1], [], []>} : vector<32x128xbf16>, vector<128x128xbf16>, vector<32x128xf32> -> vector<32x128xf32>
    %c2_16 = arith.constant 2 : index
    %c0_17 = arith.constant 0 : index
    %27 = vector.load %arg2[%c2_16, %c0_17] : memref<7x128xf32, #tpu.memory_space<vmem>>, vector<1x128xf32>
    %28 = vector.shape_cast %27 : vector<1x128xf32> to vector<128xf32>
    %29 = vector.shape_cast %28 : vector<128xf32> to vector<1x128xf32>
    %30 = vector.broadcast %29 : vector<1x128xf32> to vector<32x128xf32>
    %31 = arith.addf %26, %30 : vector<32x128xf32>
    %cst_18 = arith.constant 0.000000e+00 : f32
    %32 = vector.broadcast %cst_18 : f32 to vector<32x128xf32>
    %33 = arith.maximumf %31, %32 : vector<32x128xf32>
    %34 = arith.truncf %33 : vector<32x128xf32> to vector<32x128xbf16>
    %c3 = arith.constant 3 : index
    %c0_19 = arith.constant 0 : index
    %c0_20 = arith.constant 0 : index
    %35 = vector.load %arg1[%c3, %c0_19, %c0_20] : memref<7x128x128xbf16, #tpu.memory_space<vmem>>, vector<1x128x128xbf16>
    %36 = vector.shape_cast %35 : vector<1x128x128xbf16> to vector<128x128xbf16>
    %cst_21 = arith.constant dense<0.000000e+00> : vector<32x128xf32>
    %37 = tpu.matmul %34, %36, %cst_21 {dimension_numbers = #tpu.dot_dimension_numbers<[1], [0], [0], [1], [0, 0, 1, 1], [], []>} : vector<32x128xbf16>, vector<128x128xbf16>, vector<32x128xf32> -> vector<32x128xf32>
    %c3_22 = arith.constant 3 : index
    %c0_23 = arith.constant 0 : index
    %38 = vector.load %arg2[%c3_22, %c0_23] : memref<7x128xf32, #tpu.memory_space<vmem>>, vector<1x128xf32>
    %39 = vector.shape_cast %38 : vector<1x128xf32> to vector<128xf32>
    %40 = vector.shape_cast %39 : vector<128xf32> to vector<1x128xf32>
    %41 = vector.broadcast %40 : vector<1x128xf32> to vector<32x128xf32>
    %42 = arith.addf %37, %41 : vector<32x128xf32>
    %cst_24 = arith.constant 0.000000e+00 : f32
    %43 = vector.broadcast %cst_24 : f32 to vector<32x128xf32>
    %44 = arith.maximumf %42, %43 : vector<32x128xf32>
    %45 = arith.truncf %44 : vector<32x128xf32> to vector<32x128xbf16>
    %c4 = arith.constant 4 : index
    %c0_25 = arith.constant 0 : index
    %c0_26 = arith.constant 0 : index
    %46 = vector.load %arg1[%c4, %c0_25, %c0_26] : memref<7x128x128xbf16, #tpu.memory_space<vmem>>, vector<1x128x128xbf16>
    %47 = vector.shape_cast %46 : vector<1x128x128xbf16> to vector<128x128xbf16>
    %cst_27 = arith.constant dense<0.000000e+00> : vector<32x128xf32>
    %48 = tpu.matmul %45, %47, %cst_27 {dimension_numbers = #tpu.dot_dimension_numbers<[1], [0], [0], [1], [0, 0, 1, 1], [], []>} : vector<32x128xbf16>, vector<128x128xbf16>, vector<32x128xf32> -> vector<32x128xf32>
    %c4_28 = arith.constant 4 : index
    %c0_29 = arith.constant 0 : index
    %49 = vector.load %arg2[%c4_28, %c0_29] : memref<7x128xf32, #tpu.memory_space<vmem>>, vector<1x128xf32>
    %50 = vector.shape_cast %49 : vector<1x128xf32> to vector<128xf32>
    %51 = vector.shape_cast %50 : vector<128xf32> to vector<1x128xf32>
    %52 = vector.broadcast %51 : vector<1x128xf32> to vector<32x128xf32>
    %53 = arith.addf %48, %52 : vector<32x128xf32>
    %c0_30 = arith.constant 0 : index
    %c0_31 = arith.constant 0 : index
    %c0_32 = arith.constant 0 : index
    %54 = vector.load %arg3[%c0_30, %c0_31, %c0_32] : memref<2x32x128xf32, #tpu.memory_space<vmem>>, vector<1x32x128xf32>
    %55 = vector.shape_cast %54 : vector<1x32x128xf32> to vector<32x128xf32>
    %56 = vector.shape_cast %53 : vector<32x128xf32> to vector<1x32x128xf32>
    tpu.vector_store %arg3[%c0_30, %c0_31, %c0_32], %56 {strides = array<i32>} : memref<2x32x128xf32, #tpu.memory_space<vmem>>, vector<1x32x128xf32>,
    %57 = arith.truncf %22 : vector<32x128xf32> to vector<32x128xbf16>
    %c5 = arith.constant 5 : index
    %c0_33 = arith.constant 0 : index
    %c0_34 = arith.constant 0 : index
    %58 = vector.load %arg1[%c5, %c0_33, %c0_34] : memref<7x128x128xbf16, #tpu.memory_space<vmem>>, vector<1x128x128xbf16>
    %59 = vector.shape_cast %58 : vector<1x128x128xbf16> to vector<128x128xbf16>
    %cst_35 = arith.constant dense<0.000000e+00> : vector<32x128xf32>
    %60 = tpu.matmul %57, %59, %cst_35 {dimension_numbers = #tpu.dot_dimension_numbers<[1], [0], [0], [1], [0, 0, 1, 1], [], []>} : vector<32x128xbf16>, vector<128x128xbf16>, vector<32x128xf32> -> vector<32x128xf32>
    %c5_36 = arith.constant 5 : index
    %c0_37 = arith.constant 0 : index
    %61 = vector.load %arg2[%c5_36, %c0_37] : memref<7x128xf32, #tpu.memory_space<vmem>>, vector<1x128xf32>
    %62 = vector.shape_cast %61 : vector<1x128xf32> to vector<128xf32>
    %63 = vector.shape_cast %62 : vector<128xf32> to vector<1x128xf32>
    %64 = vector.broadcast %63 : vector<1x128xf32> to vector<32x128xf32>
    %65 = arith.addf %60, %64 : vector<32x128xf32>
    %cst_38 = arith.constant 0.000000e+00 : f32
    %66 = vector.broadcast %cst_38 : f32 to vector<32x128xf32>
    %67 = arith.maximumf %65, %66 : vector<32x128xf32>
    %68 = arith.truncf %67 : vector<32x128xf32> to vector<32x128xbf16>
    %c6 = arith.constant 6 : index
    %c0_39 = arith.constant 0 : index
    %c0_40 = arith.constant 0 : index
    %69 = vector.load %arg1[%c6, %c0_39, %c0_40] : memref<7x128x128xbf16, #tpu.memory_space<vmem>>, vector<1x128x128xbf16>
    %70 = vector.shape_cast %69 : vector<1x128x128xbf16> to vector<128x128xbf16>
    %cst_41 = arith.constant dense<0.000000e+00> : vector<32x128xf32>
    %71 = tpu.matmul %68, %70, %cst_41 {dimension_numbers = #tpu.dot_dimension_numbers<[1], [0], [0], [1], [0, 0, 1, 1], [], []>} : vector<32x128xbf16>, vector<128x128xbf16>, vector<32x128xf32> -> vector<32x128xf32>
    %c6_42 = arith.constant 6 : index
    %c0_43 = arith.constant 0 : index
    %72 = vector.load %arg2[%c6_42, %c0_43] : memref<7x128xf32, #tpu.memory_space<vmem>>, vector<1x128xf32>
    %73 = vector.shape_cast %72 : vector<1x128xf32> to vector<128xf32>
    %74 = vector.shape_cast %73 : vector<128xf32> to vector<1x128xf32>
    %75 = vector.broadcast %74 : vector<1x128xf32> to vector<32x128xf32>
    %76 = arith.addf %71, %75 : vector<32x128xf32>
    %c1_44 = arith.constant 1 : index
    %c0_45 = arith.constant 0 : index
    %c0_46 = arith.constant 0 : index
    %77 = vector.load %arg3[%c1_44, %c0_45, %c0_46] : memref<2x32x128xf32, #tpu.memory_space<vmem>>, vector<1x32x128xf32>
    %78 = vector.shape_cast %77 : vector<1x32x128xf32> to vector<32x128xf32>
    %79 = vector.shape_cast %76 : vector<32x128xf32> to vector<1x32x128xf32>
    tpu.vector_store %arg3[%c1_44, %c0_45, %c0_46], %79 {strides = array<i32>} : memref<2x32x128xf32, #tpu.memory_space<vmem>>, vector<1x32x128xf32>,
    return
  }
}

</mosaic_0001>

<llo_original>
// kernel: _forward_impl.1
$region0: #{_forward_impl.1}
  #allocation0 [shape = 'u32[]', space=smem, size = 0x4, offset = 0x4, fixed_abs, tag = 'smem constant byte address 0x4 - core index']
  #allocation1 [shape = 'u32[72,128]{1,0:T(1,128)}', space=vmem, size = 0x9000, scoped, tag = 'internal scratch']
  %s0 = inlined_call_operand.vmem [shape: f32[32,128], index: 0, kind: input, shape index: {}]
  %s1 = inlined_call_operand.hbm [shape: bf16[7,128,128], index: 1, kind: input, shape index: {}]
  %s2 = inlined_call_operand.vmem [shape: f32[7,128], index: 2, kind: input, shape index: {}]
  %s3 = inlined_call_operand.vmem [shape: f32[2,32,128], index: 3, kind: output, shape index: {}]
  %s4 = sld [smem:[#allocation0]]
  $region26: #{_forward_impl.1} parent=0
    _
  %s6 = ssub.s32 1, %s4
  %s7 = scalar_select 0, %s6, %s4
  $region1: #{_forward_impl.1} parent=0
    #allocation2 [shape = 'u8[229376]{0}', space=vmem, size = 0x38000, scoped, tag = 'input window, operand 1, single buffered']
    #allocation3 [shape = 's32[1]{0}', space=sflag, size = 0x4, scoped, tag = 'scoped memory for _forward_impl.1']
    %8 = vsyncpa [#allocation3], 0
    // Predicated region
    $region2: #{_forward_impl.1} parent=1 // pred_check
      _
    $region3: #{_forward_impl.1} parent=1 // pred_check_branch
      %10 = sbr.rel (0) target = $region5
    $region4: #{_forward_impl.1} parent=1 // pred_region
      _
    $region5: #{_forward_impl.1} parent=1 // pred_fallthru
      _
    // Predicated region
    $region6: #{_forward_impl.1} parent=1 // pred_check
      _
    $region7: #{_forward_impl.1} parent=1 // pred_check_branch
      %12 = sbr.rel (0) target = $region9
    $region8: #{_forward_impl.1} parent=1 // pred_region
      %14 = vsyncadd [#allocation3], 0
      %s15 = sshll.u32 %s1, 4
      %s16 = int_to_ptr.hbm [resolvable:$true] %s15
      %s17 = sshll.u32 [#allocation2], 4
      %s18 = int_to_ptr.vmem [resolvable:$true] %s17
      %23 = dma.hbm_to_vmem [thread:$0]  %s16, 7168, %s18, [#allocation3], 64, 64, 4
    $region9: #{_forward_impl.1} parent=1 // pred_fallthru
      _
    // Predicated region
    $region10: #{_forward_impl.1} parent=1 // pred_check
      _
    $region11: #{_forward_impl.1} parent=1 // pred_check_branch
      %25 = sbr.rel (0) target = $region13
    $region12: #{_forward_impl.1} parent=1 // pred_region
      _
    $region13: #{_forward_impl.1} parent=1 // pred_fallthru
      _
    // Predicated region
    $region14: #{_forward_impl.1} parent=1 // pred_check
      _
    $region15: #{_forward_impl.1} parent=1 // pred_check_branch
      %27 = sbr.rel (0) target = $region17
    $region16: #{_forward_impl.1} parent=1 // pred_region
      %29 = dma.done [#allocation3], 7168
    $region17: #{_forward_impl.1} parent=1 // pred_fallthru
      _
    %v30 = vld [vmem:[%s0] sm:$0xff]
    %v31 = vld [vmem:[%s0 + $0x8] sm:$0xff]
    %v32 = vld [vmem:[%s0 + $0x10] sm:$0xff]
    %v33 = vld [vmem:[%s0 + $0x18] sm:$0xff]
    %v34 = vpack.c.bf16 %v31, %v30
    %v35 = vpack.c.bf16 %v33, %v32
    %v36 = vld [vmem:[#allocation2] sm:$0xf]
    %v37 = vld [vmem:[#allocation2 + $0x4] sm:$0xf]
    %v38 = vld [vmem:[#allocation2 + $0x8] sm:$0xf]
    %v39 = vld [vmem:[#allocation2 + $0xc] sm:$0xf]
    %v40 = vld [vmem:[#allocation2 + $0x10] sm:$0xf]
    %v41 = vld [vmem:[#allocation2 + $0x14] sm:$0xf]
    %v42 = vld [vmem:[#allocation2 + $0x18] sm:$0xf]
    %v43 = vld [vmem:[#allocation2 + $0x1c] sm:$0xf]
    %v44 = vld [vmem:[#allocation2 + $0x20] sm:$0xf]
    %v45 = vld [vmem:[#allocation2 + $0x24] sm:$0xf]
    %v46 = vld [vmem:[#allocation2 + $0x28] sm:$0xf]
    %v47 = vld [vmem:[#allocation2 + $0x2c] sm:$0xf]
    %v48 = vld [vmem:[#allocation2 + $0x30] sm:$0xf]
    %v49 = vld [vmem:[#allocation2 + $0x34] sm:$0xf]
    %v50 = vld [vmem:[#allocation2 + $0x38] sm:$0xf]
    %v51 = vld [vmem:[#allocation2 + $0x3c] sm:$0xf]
    %v52 = vld [vmem:[%s2] sm:$0x1]
    %v53 = vperm.slane %v52, 0
    %v70 = vunpack.c.l.b16 %v36
    %v71 = vunpack.c.l.b16 %v37
    %v72 = vunpack.c.l.b16 %v38
    %v73 = vunpack.c.l.b16 %v39
    %v74 = vunpack.c.l.b16 %v40
    %v75 = vunpack.c.l.b16 %v41
    %v76 = vunpack.c.l.b16 %v42
    %v77 = vunpack.c.l.b16 %v43
    %v78 = vunpack.c.l.b16 %v44
    %v79 = vunpack.c.l.b16 %v45
    %v80 = vunpack.c.l.b16 %v46
    %v81 = vunpack.c.l.b16 %v47
    %v82 = vunpack.c.l.b16 %v48
    %v83 = vunpack.c.l.b16 %v49
    %v84 = vunpack.c.l.b16 %v50
    %v85 = vunpack.c.l.b16 %v51
    %v86 = vpack.c.b16 %v71, %v70
    %v87 = vpack.c.b16 %v73, %v72
    %v88 = vpack.c.b16 %v75, %v74
    %v89 = vpack.c.b16 %v77, %v76
    %v90 = vpack.c.b16 %v79, %v78
    %v91 = vpack.c.b16 %v81, %v80
    %v92 = vpack.c.b16 %v83, %v82
    %v93 = vpack.c.b16 %v85, %v84
    %102 = vmatpush.bf16.msra.mxu0 %v93
    %103 = vmatpush.bf16.msra.mxu0 %v92
    %104 = vmatpush.bf16.msra.mxu0 %v91
    %105 = vmatpush.bf16.msra.mxu0 %v90
    %106 = vmatpush.bf16.msra.mxu0 %v89
    %107 = vmatpush.bf16.msra.mxu0 %v88
    %108 = vmatpush.bf16.msra.mxu0 %v87
    %109 = vmatpush.bf16.msra.mxu0 %v86
    %110 = vmatmul.bf16.gmra.mxu0 %v34
    %v111 = vpop.f32.mrf.mxu0
    %v112 = vadd.f32 %v53, %v111
    %v113 = vpop.f32.mrf.mxu0
    %v114 = vadd.f32 %v53, %v113
    %115 = vmatmul.bf16.gmra.mxu0 %v35
    %v116 = vpop.f32.mrf.mxu0
    %v117 = vadd.f32 %v53, %v116
    %v118 = vpop.f32.mrf.mxu0
    %v119 = vadd.f32 %v53, %v118
    %120 = vdwg.mxu0
    %v121 = vmax.f32 %v112, 0.0
    %v122 = vmax.f32 %v114, 0.0
    %v123 = vmax.f32 %v117, 0.0
    %v124 = vmax.f32 %v119, 0.0
    %v125 = vpack.c.bf16 %v122, %v121
    %v126 = vpack.c.bf16 %v124, %v123
    %s127 = scalar_lea.vmem [#allocation2], 64
    %v128 = vld [vmem:[%s127] sm:$0xf]
    %v129 = vld [vmem:[%s127 + $0x4] sm:$0xf]
    %v130 = vld [vmem:[%s127 + $0x8] sm:$0xf]
    %v131 = vld [vmem:[%s127 + $0xc] sm:$0xf]
    %v132 = vld [vmem:[%s127 + $0x10] sm:$0xf]
    %v133 = vld [vmem:[%s127 + $0x14] sm:$0xf]
    %v134 = vld [vmem:[%s127 + $0x18] sm:$0xf]
    %v135 = vld [vmem:[%s127 + $0x1c] sm:$0xf]
    %v136 = vld [vmem:[%s127 + $0x20] sm:$0xf]
    %v137 = vld [vmem:[%s127 + $0x24] sm:$0xf]
    %v138 = vld [vmem:[%s127 + $0x28] sm:$0xf]
    %v139 = vld [vmem:[%s127 + $0x2c] sm:$0xf]
    %v140 = vld [vmem:[%s127 + $0x30] sm:$0xf]
    %v141 = vld [vmem:[%s127 + $0x34] sm:$0xf]
    %v142 = vld [vmem:[%s127 + $0x38] sm:$0xf]
    %v143 = vld [vmem:[%s127 + $0x3c] sm:$0xf]
    %v144 = vld [vmem:[%s2 + $0x1] sm:$0x1]
    %v145 = vperm.slane %v144, 0
    %v162 = vunpack.c.l.b16 %v128
    %v163 = vunpack.c.l.b16 %v129
    %v164 = vunpack.c.l.b16 %v130
    %v165 = vunpack.c.l.b16 %v131
    %v166 = vunpack.c.l.b16 %v132
    %v167 = vunpack.c.l.b16 %v133
    %v168 = vunpack.c.l.b16 %v134
    %v169 = vunpack.c.l.b16 %v135
    %v170 = vunpack.c.l.b16 %v136
    %v171 = vunpack.c.l.b16 %v137
    %v172 = vunpack.c.l.b16 %v138
    %v173 = vunpack.c.l.b16 %v139
    %v174 = vunpack.c.l.b16 %v140
    %v175 = vunpack.c.l.b16 %v141
    %v176 = vunpack.c.l.b16 %v142
    %v177 = vunpack.c.l.b16 %v143
    %v178 = vpack.c.b16 %v163, %v162
    %v179 = vpack.c.b16 %v165, %v164
    %v180 = vpack.c.b16 %v167, %v166
    %v181 = vpack.c.b16 %v169, %v168
    %v182 = vpack.c.b16 %v171, %v170
    %v183 = vpack.c.b16 %v173, %v172
    %v184 = vpack.c.b16 %v175, %v174
    %v185 = vpack.c.b16 %v177, %v176
    %194 = vmatpush.bf16.msra.mxu0 %v185
    %195 = vmatpush.bf16.msra.mxu0 %v184
    %196 = vmatpush.bf16.msra.mxu0 %v183
    %197 = vmatpush.bf16.msra.mxu0 %v182
    %198 = vmatpush.bf16.msra.mxu0 %v181
    %199 = vmatpush.bf16.msra.mxu0 %v180
    %200 = vmatpush.bf16.msra.mxu0 %v179
    %201 = vmatpush.bf16.msra.mxu0 %v178
    %202 = vmatmul.bf16.gmra.mxu0 %v125
    %v203 = vpop.f32.mrf.mxu0
    %v204 = vadd.f32 %v145, %v203
    %v205 = vpop.f32.mrf.mxu0
    %v206 = vadd.f32 %v145, %v205
    %207 = vmatmul.bf16.gmra.mxu0 %v126
    %v208 = vpop.f32.mrf.mxu0
    %v209 = vadd.f32 %v145, %v208
    %v210 = vpop.f32.mrf.mxu0
    %v211 = vadd.f32 %v145, %v210
    %212 = vdwg.mxu0
    %v213 = vmax.f32 %v204, 0.0
    %v214 = vmax.f32 %v206, 0.0
    %v215 = vmax.f32 %v209, 0.0
    %v216 = vmax.f32 %v211, 0.0
    %v217 = vpack.c.bf16 %v214, %v213
    %v218 = vpack.c.bf16 %v216, %v215
    %s219 = scalar_lea.vmem [#allocation2], 128
    %v220 = vld [vmem:[%s219] sm:$0xf]
    %v221 = vld [vmem:[%s219 + $0x4] sm:$0xf]
    %v222 = vld [vmem:[%s219 + $0x8] sm:$0xf]
    %v223 = vld [vmem:[%s219 + $0xc] sm:$0xf]
    %v224 = vld [vmem:[%s219 + $0x10] sm:$0xf]
    %v225 = vld [vmem:[%s219 + $0x14] sm:$0xf]
    %v226 = vld [vmem:[%s219 + $0x18] sm:$0xf]
    %v227 = vld [vmem:[%s219 + $0x1c] sm:$0xf]
    %v228 = vld [vmem:[%s219 + $0x20] sm:$0xf]
    %v229 = vld [vmem:[%s219 + $0x24] sm:$0xf]
    %v230 = vld [vmem:[%s219 + $0x28] sm:$0xf]
    %v231 = vld [vmem:[%s219 + $0x2c] sm:$0xf]
    %v232 = vld [vmem:[%s219 + $0x30] sm:$0xf]
    %v233 = vld [vmem:[%s219 + $0x34] sm:$0xf]
    %v234 = vld [vmem:[%s219 + $0x38] sm:$0xf]
    %v235 = vld [vmem:[%s219 + $0x3c] sm:$0xf]
    %v236 = vld [vmem:[%s2 + $0x2] sm:$0x1]
    %v237 = vperm.slane %v236, 0
    %v254 = vunpack.c.l.b16 %v220
    %v255 = vunpack.c.l.b16 %v221
    %v256 = vunpack.c.l.b16 %v222
    %v257 = vunpack.c.l.b16 %v223
    %v258 = vunpack.c.l.b16 %v224
    %v259 = vunpack.c.l.b16 %v225
    %v260 = vunpack.c.l.b16 %v226
    %v261 = vunpack.c.l.b16 %v227
    %v262 = vunpack.c.l.b16 %v228
    %v263 = vunpack.c.l.b16 %v229
    %v264 = vunpack.c.l.b16 %v230
    %v265 = vunpack.c.l.b16 %v231
    %v266 = vunpack.c.l.b16 %v232
    %v267 = vunpack.c.l.b16 %v233
    %v268 = vunpack.c.l.b16 %v234
    %v269 = vunpack.c.l.b16 %v235
    %v270 = vpack.c.b16 %v255, %v254
    %v271 = vpack.c.b16 %v257, %v256
    %v272 = vpack.c.b16 %v259, %v258
    %v273 = vpack.c.b16 %v261, %v260
    %v274 = vpack.c.b16 %v263, %v262
    %v275 = vpack.c.b16 %v265, %v264
    %v276 = vpack.c.b16 %v267, %v266
    %v277 = vpack.c.b16 %v269, %v268
    %286 = vmatpush.bf16.msra.mxu0 %v277
    %287 = vmatpush.bf16.msra.mxu0 %v276
    %288 = vmatpush.bf16.msra.mxu0 %v275
    %289 = vmatpush.bf16.msra.mxu0 %v274
    %290 = vmatpush.bf16.msra.mxu0 %v273
    %291 = vmatpush.bf16.msra.mxu0 %v272
    %292 = vmatpush.bf16.msra.mxu0 %v271
    %293 = vmatpush.bf16.msra.mxu0 %v270
    %294 = vmatmul.bf16.gmra.mxu0 %v217
    %v295 = vpop.f32.mrf.mxu0
    %v296 = vadd.f32 %v237, %v295
    %v297 = vpop.f32.mrf.mxu0
    %v298 = vadd.f32 %v237, %v297
    %299 = vmatmul.bf16.gmra.mxu0 %v218
    %v300 = vpop.f32.mrf.mxu0
    %v301 = vadd.f32 %v237, %v300
    %v302 = vpop.f32.mrf.mxu0
    %v303 = vadd.f32 %v237, %v302
    %304 = vdwg.mxu0
    %v305 = vmax.f32 %v296, 0.0
    %v306 = vmax.f32 %v298, 0.0
    %v307 = vmax.f32 %v301, 0.0
    %v308 = vmax.f32 %v303, 0.0
    %v309 = vpack.c.bf16 %v306, %v305
    %v310 = vpack.c.bf16 %v308, %v307
    %s311 = scalar_lea.vmem [#allocation2], 192
    %v312 = vld [vmem:[%s311] sm:$0xf]
    %v313 = vld [vmem:[%s311 + $0x4] sm:$0xf]
    %v314 = vld [vmem:[%s311 + $0x8] sm:$0xf]
    %v315 = vld [vmem:[%s311 + $0xc] sm:$0xf]
    %v316 = vld [vmem:[%s311 + $0x10] sm:$0xf]
    %v317 = vld [vmem:[%s311 + $0x14] sm:$0xf]
    %v318 = vld [vmem:[%s311 + $0x18] sm:$0xf]
    %v319 = vld [vmem:[%s311 + $0x1c] sm:$0xf]
    %v320 = vld [vmem:[%s311 + $0x20] sm:$0xf]
    %v321 = vld [vmem:[%s311 + $0x24] sm:$0xf]
    %v322 = vld [vmem:[%s311 + $0x28] sm:$0xf]
    %v323 = vld [vmem:[%s311 + $0x2c] sm:$0xf]
    %v324 = vld [vmem:[%s311 + $0x30] sm:$0xf]
    %v325 = vld [vmem:[%s311 + $0x34] sm:$0xf]
    %v326 = vld [vmem:[%s311 + $0x38] sm:$0xf]
    %v327 = vld [vmem:[%s311 + $0x3c] sm:$0xf]
    %v328 = vld [vmem:[%s2 + $0x3] sm:$0x1]
    %v329 = vperm.slane %v328, 0
    %v346 = vunpack.c.l.b16 %v312
    %v347 = vunpack.c.l.b16 %v313
    %v348 = vunpack.c.l.b16 %v314
    %v349 = vunpack.c.l.b16 %v315
    %v350 = vunpack.c.l.b16 %v316
    %v351 = vunpack.c.l.b16 %v317
    %v352 = vunpack.c.l.b16 %v318
    %v353 = vunpack.c.l.b16 %v319
    %v354 = vunpack.c.l.b16 %v320
    %v355 = vunpack.c.l.b16 %v321
    %v356 = vunpack.c.l.b16 %v322
    %v357 = vunpack.c.l.b16 %v323
    %v358 = vunpack.c.l.b16 %v324
    %v359 = vunpack.c.l.b16 %v325
    %v360 = vunpack.c.l.b16 %v326
    %v361 = vunpack.c.l.b16 %v327
    %v362 = vpack.c.b16 %v347, %v346
    %v363 = vpack.c.b16 %v349, %v348
    %v364 = vpack.c.b16 %v351, %v350
    %v365 = vpack.c.b16 %v353, %v352
    %v366 = vpack.c.b16 %v355, %v354
    %v367 = vpack.c.b16 %v357, %v356
    %v368 = vpack.c.b16 %v359, %v358
    %v369 = vpack.c.b16 %v361, %v360
    %378 = vmatpush.bf16.msra.mxu0 %v369
    %379 = vmatpush.bf16.msra.mxu0 %v368
    %380 = vmatpush.bf16.msra.mxu0 %v367
    %381 = vmatpush.bf16.msra.mxu0 %v366
    %382 = vmatpush.bf16.msra.mxu0 %v365
    %383 = vmatpush.bf16.msra.mxu0 %v364
    %384 = vmatpush.bf16.msra.mxu0 %v363
    %385 = vmatpush.bf16.msra.mxu0 %v362
    %386 = vmatmul.bf16.gmra.mxu0 %v309
    %v387 = vpop.f32.mrf.mxu0
    %v388 = vadd.f32 %v329, %v387
    %v389 = vpop.f32.mrf.mxu0
    %v390 = vadd.f32 %v329, %v389
    %391 = vmatmul.bf16.gmra.mxu0 %v310
    %v392 = vpop.f32.mrf.mxu0
    %v393 = vadd.f32 %v329, %v392
    %v394 = vpop.f32.mrf.mxu0
    %v395 = vadd.f32 %v329, %v394
    %396 = vdwg.mxu0
    %v397 = vmax.f32 %v388, 0.0
    %v398 = vmax.f32 %v390, 0.0
    %v399 = vmax.f32 %v393, 0.0
    %v400 = vmax.f32 %v395, 0.0
    %v401 = vpack.c.bf16 %v398, %v397
    %v402 = vpack.c.bf16 %v400, %v399
    %s403 = scalar_lea.vmem [#allocation2], 256
    %v404 = vld [vmem:[%s403] sm:$0xf]
    %v405 = vld [vmem:[%s403 + $0x4] sm:$0xf]
    %v406 = vld [vmem:[%s403 + $0x8] sm:$0xf]
    %v407 = vld [vmem:[%s403 + $0xc] sm:$0xf]
    %v408 = vld [vmem:[%s403 + $0x10] sm:$0xf]
    %v409 = vld [vmem:[%s403 + $0x14] sm:$0xf]
    %v410 = vld [vmem:[%s403 + $0x18] sm:$0xf]
    %v411 = vld [vmem:[%s403 + $0x1c] sm:$0xf]
    %v412 = vld [vmem:[%s403 + $0x20] sm:$0xf]
    %v413 = vld [vmem:[%s403 + $0x24] sm:$0xf]
    %v414 = vld [vmem:[%s403 + $0x28] sm:$0xf]
    %v415 = vld [vmem:[%s403 + $0x2c] sm:$0xf]
    %v416 = vld [vmem:[%s403 + $0x30] sm:$0xf]
    %v417 = vld [vmem:[%s403 + $0x34] sm:$0xf]
    %v418 = vld [vmem:[%s403 + $0x38] sm:$0xf]
    %v419 = vld [vmem:[%s403 + $0x3c] sm:$0xf]
    %v420 = vld [vmem:[%s2 + $0x4] sm:$0x1]
    %v421 = vperm.slane %v420, 0
    %v438 = vunpack.c.l.b16 %v404
    %v439 = vunpack.c.l.b16 %v405
    %v440 = vunpack.c.l.b16 %v406
    %v441 = vunpack.c.l.b16 %v407
    %v442 = vunpack.c.l.b16 %v408
    %v443 = vunpack.c.l.b16 %v409
    %v444 = vunpack.c.l.b16 %v410
    %v445 = vunpack.c.l.b16 %v411
    %v446 = vunpack.c.l.b16 %v412
    %v447 = vunpack.c.l.b16 %v413
    %v448 = vunpack.c.l.b16 %v414
    %v449 = vunpack.c.l.b16 %v415
    %v450 = vunpack.c.l.b16 %v416
    %v451 = vunpack.c.l.b16 %v417
    %v452 = vunpack.c.l.b16 %v418
    %v453 = vunpack.c.l.b16 %v419
    %v454 = vpack.c.b16 %v439, %v438
    %v455 = vpack.c.b16 %v441, %v440
    %v456 = vpack.c.b16 %v443, %v442
    %v457 = vpack.c.b16 %v445, %v444
    %v458 = vpack.c.b16 %v447, %v446
    %v459 = vpack.c.b16 %v449, %v448
    %v460 = vpack.c.b16 %v451, %v450
    %v461 = vpack.c.b16 %v453, %v452
    %470 = vmatpush.bf16.msra.mxu0 %v461
    %471 = vmatpush.bf16.msra.mxu0 %v460
    %472 = vmatpush.bf16.msra.mxu0 %v459
    %473 = vmatpush.bf16.msra.mxu0 %v458
    %474 = vmatpush.bf16.msra.mxu0 %v457
    %475 = vmatpush.bf16.msra.mxu0 %v456
    %476 = vmatpush.bf16.msra.mxu0 %v455
    %477 = vmatpush.bf16.msra.mxu0 %v454
    %478 = vmatmul.bf16.gmra.mxu0 %v401
    %v479 = vpop.f32.mrf.mxu0
    %v480 = vadd.f32 %v421, %v479
    %v481 = vpop.f32.mrf.mxu0
    %v482 = vadd.f32 %v421, %v481
    %483 = vmatmul.bf16.gmra.mxu0 %v402
    %v484 = vpop.f32.mrf.mxu0
    %v485 = vadd.f32 %v421, %v484
    %v486 = vpop.f32.mrf.mxu0
    %v487 = vadd.f32 %v421, %v486
    %488 = vdwg.mxu0
    %489 = vst [vmem:[%s3] sm:$0xff] %v480
    %490 = vst [vmem:[%s3 + $0x8] sm:$0xff] %v482
    %491 = vst [vmem:[%s3 + $0x10] sm:$0xff] %v485
    %492 = vst [vmem:[%s3 + $0x18] sm:$0xff] %v487
    %s493 = scalar_lea.vmem [#allocation2], 320
    %v494 = vld [vmem:[%s493] sm:$0xf]
    %v495 = vld [vmem:[%s493 + $0x4] sm:$0xf]
    %v496 = vld [vmem:[%s493 + $0x8] sm:$0xf]
    %v497 = vld [vmem:[%s493 + $0xc] sm:$0xf]
    %v498 = vld [vmem:[%s493 + $0x10] sm:$0xf]
    %v499 = vld [vmem:[%s493 + $0x14] sm:$0xf]
    %v500 = vld [vmem:[%s493 + $0x18] sm:$0xf]
    %v501 = vld [vmem:[%s493 + $0x1c] sm:$0xf]
    %v502 = vld [vmem:[%s493 + $0x20] sm:$0xf]
    %v503 = vld [vmem:[%s493 + $0x24] sm:$0xf]
    %v504 = vld [vmem:[%s493 + $0x28] sm:$0xf]
    %v505 = vld [vmem:[%s493 + $0x2c] sm:$0xf]
    %v506 = vld [vmem:[%s493 + $0x30] sm:$0xf]
    %v507 = vld [vmem:[%s493 + $0x34] sm:$0xf]
    %v508 = vld [vmem:[%s493 + $0x38] sm:$0xf]
    %v509 = vld [vmem:[%s493 + $0x3c] sm:$0xf]
    %v510 = vld [vmem:[%s2 + $0x5] sm:$0x1]
    %v511 = vperm.slane %v510, 0
    %v528 = vunpack.c.l.b16 %v494
    %v529 = vunpack.c.l.b16 %v495
    %v530 = vunpack.c.l.b16 %v496
    %v531 = vunpack.c.l.b16 %v497
    %v532 = vunpack.c.l.b16 %v498
    %v533 = vunpack.c.l.b16 %v499
    %v534 = vunpack.c.l.b16 %v500
    %v535 = vunpack.c.l.b16 %v501
    %v536 = vunpack.c.l.b16 %v502
    %v537 = vunpack.c.l.b16 %v503
    %v538 = vunpack.c.l.b16 %v504
    %v539 = vunpack.c.l.b16 %v505
    %v540 = vunpack.c.l.b16 %v506
    %v541 = vunpack.c.l.b16 %v507
    %v542 = vunpack.c.l.b16 %v508
    %v543 = vunpack.c.l.b16 %v509
    %v544 = vpack.c.b16 %v529, %v528
    %v545 = vpack.c.b16 %v531, %v530
    %v546 = vpack.c.b16 %v533, %v532
    %v547 = vpack.c.b16 %v535, %v534
    %v548 = vpack.c.b16 %v537, %v536
    %v549 = vpack.c.b16 %v539, %v538
    %v550 = vpack.c.b16 %v541, %v540
    %v551 = vpack.c.b16 %v543, %v542
    %560 = vmatpush.bf16.msra.mxu0 %v551
    %561 = vmatpush.bf16.msra.mxu0 %v550
    %562 = vmatpush.bf16.msra.mxu0 %v549
    %563 = vmatpush.bf16.msra.mxu0 %v548
    %564 = vmatpush.bf16.msra.mxu0 %v547
    %565 = vmatpush.bf16.msra.mxu0 %v546
    %566 = vmatpush.bf16.msra.mxu0 %v545
    %567 = vmatpush.bf16.msra.mxu0 %v544
    %568 = vmatmul.bf16.gmra.mxu0 %v217
    %v569 = vpop.f32.mrf.mxu0
    %v570 = vadd.f32 %v511, %v569
    %v571 = vpop.f32.mrf.mxu0
    %v572 = vadd.f32 %v511, %v571
    %573 = vmatmul.bf16.gmra.mxu0 %v218
    %v574 = vpop.f32.mrf.mxu0
    %v575 = vadd.f32 %v511, %v574
    %v576 = vpop.f32.mrf.mxu0
    %v577 = vadd.f32 %v511, %v576
    %578 = vdwg.mxu0
    %v579 = vmax.f32 %v570, 0.0
    %v580 = vmax.f32 %v572, 0.0
    %v581 = vmax.f32 %v575, 0.0
    %v582 = vmax.f32 %v577, 0.0
    %v583 = vpack.c.bf16 %v580, %v579
    %v584 = vpack.c.bf16 %v582, %v581
    %s585 = scalar_lea.vmem [#allocation2], 384
    %v586 = vld [vmem:[%s585] sm:$0xf]
    %v587 = vld [vmem:[%s585 + $0x4] sm:$0xf]
    %v588 = vld [vmem:[%s585 + $0x8] sm:$0xf]
    %v589 = vld [vmem:[%s585 + $0xc] sm:$0xf]
    %v590 = vld [vmem:[%s585 + $0x10] sm:$0xf]
    %v591 = vld [vmem:[%s585 + $0x14] sm:$0xf]
    %v592 = vld [vmem:[%s585 + $0x18] sm:$0xf]
    %v593 = vld [vmem:[%s585 + $0x1c] sm:$0xf]
    %v594 = vld [vmem:[%s585 + $0x20] sm:$0xf]
    %v595 = vld [vmem:[%s585 + $0x24] sm:$0xf]
    %v596 = vld [vmem:[%s585 + $0x28] sm:$0xf]
    %v597 = vld [vmem:[%s585 + $0x2c] sm:$0xf]
    %v598 = vld [vmem:[%s585 + $0x30] sm:$0xf]
    %v599 = vld [vmem:[%s585 + $0x34] sm:$0xf]
    %v600 = vld [vmem:[%s585 + $0x38] sm:$0xf]
    %v601 = vld [vmem:[%s585 + $0x3c] sm:$0xf]
    %v602 = vld [vmem:[%s2 + $0x6] sm:$0x1]
    %v603 = vperm.slane %v602, 0
    %v620 = vunpack.c.l.b16 %v586
    %v621 = vunpack.c.l.b16 %v587
    %v622 = vunpack.c.l.b16 %v588
    %v623 = vunpack.c.l.b16 %v589
    %v624 = vunpack.c.l.b16 %v590
    %v625 = vunpack.c.l.b16 %v591
    %v626 = vunpack.c.l.b16 %v592
    %v627 = vunpack.c.l.b16 %v593
    %v628 = vunpack.c.l.b16 %v594
    %v629 = vunpack.c.l.b16 %v595
    %v630 = vunpack.c.l.b16 %v596
    %v631 = vunpack.c.l.b16 %v597
    %v632 = vunpack.c.l.b16 %v598
    %v633 = vunpack.c.l.b16 %v599
    %v634 = vunpack.c.l.b16 %v600
    %v635 = vunpack.c.l.b16 %v601
    %v636 = vpack.c.b16 %v621, %v620
    %v637 = vpack.c.b16 %v623, %v622
    %v638 = vpack.c.b16 %v625, %v624
    %v639 = vpack.c.b16 %v627, %v626
    %v640 = vpack.c.b16 %v629, %v628
    %v641 = vpack.c.b16 %v631, %v630
    %v642 = vpack.c.b16 %v633, %v632
    %v643 = vpack.c.b16 %v635, %v634
    %652 = vmatpush.bf16.msra.mxu0 %v643
    %653 = vmatpush.bf16.msra.mxu0 %v642
    %654 = vmatpush.bf16.msra.mxu0 %v641
    %655 = vmatpush.bf16.msra.mxu0 %v640
    %656 = vmatpush.bf16.msra.mxu0 %v639
    %657 = vmatpush.bf16.msra.mxu0 %v638
    %658 = vmatpush.bf16.msra.mxu0 %v637
    %659 = vmatpush.bf16.msra.mxu0 %v636
    %660 = vmatmul.bf16.gmra.mxu0 %v583
    %v661 = vpop.f32.mrf.mxu0
    %v662 = vadd.f32 %v603, %v661
    %v663 = vpop.f32.mrf.mxu0
    %v664 = vadd.f32 %v603, %v663
    %665 = vmatmul.bf16.gmra.mxu0 %v584
    %v666 = vpop.f32.mrf.mxu0
    %v667 = vadd.f32 %v603, %v666
    %v668 = vpop.f32.mrf.mxu0
    %v669 = vadd.f32 %v603, %v668
    %670 = vdwg.mxu0
    %s671 = scalar_lea.vmem %s3, 32
    %672 = vst [vmem:[%s671] sm:$0xff] %v662
    %673 = vst [vmem:[%s671 + $0x8] sm:$0xff] %v664
    %674 = vst [vmem:[%s671 + $0x10] sm:$0xff] %v667
    %675 = vst [vmem:[%s671 + $0x18] sm:$0xff] %v669
    // Predicated region
    $region18: #{_forward_impl.1} parent=1 // pred_check
      _
    $region19: #{_forward_impl.1} parent=1 // pred_check_branch
      %677 = sbr.rel (0) target = $region21
    $region20: #{_forward_impl.1} parent=1 // pred_region
      _
    $region21: #{_forward_impl.1} parent=1 // pred_fallthru
      _
    // Predicated region
    $region22: #{_forward_impl.1} parent=1 // pred_check
      _
    $region23: #{_forward_impl.1} parent=1 // pred_check_branch
      %679 = sbr.rel (0) target = $region25
    $region24: #{_forward_impl.1} parent=1 // pred_region
      _
    $region25: #{_forward_impl.1} parent=1 // pred_fallthru
      _
    %680 = vsyncpa [#allocation3], 1

</llo_original>
